<compile_context>
chip_gen: v6e
topology: v6e:2x2x1
jax: 0.10.0
libtpu: 0.0.40
codegen_flags: <defaults>
</compile_context>

<pallas_src>
import math

import jax
import jax.numpy as jnp
from jax import lax
from jax.experimental import pallas as pl
from jax.experimental.pallas import tpu as pltpu


# ---------------------------------------------------------------------------
# Kernel A: fused deconv matmul + BatchNorm statistics (single pass over y)
# ---------------------------------------------------------------------------
def _deconv_stats_kernel(x_ref, w_ref, y_ref, sum_ref, sq_ref):
    # Zero the per-core resident accumulators at the start of the reduction axis.
    @pl.when(pl.program_id(1) == 0)
    def _():
        sum_ref[...] = jnp.zeros_like(sum_ref)
        sq_ref[...] = jnp.zeros_like(sq_ref)

    y = jnp.dot(x_ref[...], w_ref[...], preferred_element_type=jnp.float32)
    y_ref[...] = y
    col_sum = jnp.sum(y, axis=0, keepdims=True)        # (1, C2)
    col_sq = jnp.sum(y * y, axis=0, keepdims=True)     # (1, C2)
    sum_ref[...] += col_sum[None]                      # (1, 1, C2)
    sq_ref[...] += col_sq[None]


# ---------------------------------------------------------------------------
# Kernel B: fused BatchNorm apply + ReLU on the lane-dense tap layout
# ---------------------------------------------------------------------------
def _bn_relu_kernel(y_ref, scale_ref, shift_ref, o_ref):
    o_ref[...] = jnp.maximum(y_ref[...] * scale_ref[...] + shift_ref[...], 0.0)


# ---------------------------------------------------------------------------
# Helpers
# ---------------------------------------------------------------------------
def _pick_row_tile(rows, bytes_per_row, vmem_budget_bytes=8 << 20):
    """Largest row tile that divides `rows`, is a multiple of 8 (or == rows),
    and keeps one pipeline stage under a conservative VMEM budget."""
    max_rows = max(8, vmem_budget_bytes // max(bytes_per_row, 1))
    if rows <= max_rows:
        return rows
    t = min((max_rows // 8) * 8, rows)
    while t >= 8:
        if rows % t == 0:
            return t
        t -= 8
    return rows  # no clean divisor: fall back to a single (larger) tile


def deconv_layer_forward(x, weight, bias, gamma, beta, eps=1e-5):
    """x: (N, Cin, D, H, W) f32.  weight: (Cin, Cout, 2, 2, 2).  Returns NCDHW f32."""
    del bias  # cancelled exactly by train-mode BatchNorm's batch-mean subtraction
    N, Cin, D, H, W = x.shape
    Cout, K = weight.shape[1], weight.shape[2]
    K3 = K * K * K
    KC = K3 * Cout
    M = N * D * H * W

    # Fold `fold` consecutive voxels per row so the kernels' last dim (fold*KC) is a
    # multiple of 128 -> lane-dense, unmasked stores. fold is a power of two; fall
    # back if it does not divide the voxel count.
    fold = 128 // math.gcd(KC, 128)
    while fold > 1 and M % fold:
        fold //= 2
    rows = M // fold
    C2 = fold * KC
    Cin2 = fold * Cin

    # ---- glue: channels-last flatten of input and block-diagonal folded weight ----
    xf = jnp.transpose(x, (0, 2, 3, 4, 1)).reshape(rows, Cin2)
    wmat = jnp.transpose(weight, (0, 2, 3, 4, 1)).reshape(Cin, KC)
    w2 = jnp.kron(jnp.eye(fold, dtype=wmat.dtype), wmat)      # (Cin2, C2)

    # ---- kernel A: deconv matmul + BN stats, one pass over the activations ----
    # Leading "parallel" axis of size 2 (when shapes allow) lets both v7x
    # TensorCores run the reduction; each core owns its own partial-sum row.
    ncores = 2 if rows % 16 == 0 else 1
    rows_pc = rows // ncores
    bytes_per_row_a = 4 * (Cin2 + 2 * C2)
    tm = _pick_row_tile(rows_pc, bytes_per_row_a)
    inner_a = rows_pc // tm

    y_taps, psums, psqs = pl.pallas_call(
        _deconv_stats_kernel,
        out_shape=(
            jax.ShapeDtypeStruct((rows, C2), jnp.float32),
            jax.ShapeDtypeStruct((ncores, 1, C2), jnp.float32),
            jax.ShapeDtypeStruct((ncores, 1, C2), jnp.float32),
        ),
        grid=(ncores, inner_a),
        in_specs=[
            pl.BlockSpec((tm, Cin2), lambda c, i: (c * inner_a + i, 0)),
            pl.BlockSpec((Cin2, C2), lambda c, i: (0, 0)),
        ],
        out_specs=[
            pl.BlockSpec((tm, C2), lambda c, i: (c * inner_a + i, 0)),
            pl.BlockSpec((1, 1, C2), lambda c, i: (c, 0, 0)),
            pl.BlockSpec((1, 1, C2), lambda c, i: (c, 0, 0)),
        ],
        compiler_params=pltpu.CompilerParams(
            dimension_semantics=("parallel", "arbitrary")),
    )(xf, w2)

    # ---- tiny glue: finish BN statistics (biased batch variance, like PyTorch) ----
    count = jnp.float32(M * K3)                         # elements per channel
    sums_c = psums.reshape(-1, Cout).sum(axis=0)        # per-channel sum
    sqs_c = psqs.reshape(-1, Cout).sum(axis=0)
    mean = sums_c / count
    var = jnp.maximum(sqs_c / count - mean * mean, 0.0)  # guard tiny negatives
    invstd = lax.rsqrt(var + eps)
    scale_c = gamma * invstd
    shift_c = beta - mean * scale_c
    # Tile per-channel affine params into tap order to match y_taps columns.
    scale = jnp.tile(scale_c, (fold * K3,)).reshape(1, C2)
    shift = jnp.tile(shift_c, (fold * K3,)).reshape(1, C2)

    # ---- kernel B: fused normalize + affine + ReLU on the lane-dense layout ----
    bytes_per_row_b = 4 * 2 * C2
    tr = _pick_row_tile(rows, bytes_per_row_b)

    out_taps = pl.pallas_call(
        _bn_relu_kernel,
        out_shape=jax.ShapeDtypeStruct((rows, C2), jnp.float32),
        grid=(rows // tr,),
        in_specs=[
            pl.BlockSpec((tr, C2), lambda i: (i, 0)),
            pl.BlockSpec((1, C2), lambda i: (0, 0)),
            pl.BlockSpec((1, C2), lambda i: (0, 0)),
        ],
        out_specs=pl.BlockSpec((tr, C2), lambda i: (i, 0)),
        compiler_params=pltpu.CompilerParams(dimension_semantics=("parallel",)),
    )(y_taps, scale, shift)

    # ---- glue: single transpose does both the 2x2x2 tap interleave and NCDHW ----
    out = out_taps.reshape(N, D, H, W, K, K, K, Cout)
    out = jnp.transpose(out, (0, 7, 1, 4, 2, 5, 3, 6))
    return out.reshape(N, Cout, D * K, H * K, W * K)


# ---------------------------------------------------------------------------
# Pure-JAX reference (correctness check only)
# ---------------------------------------------------------------------------
def _reference_forward(x, weight, bias, gamma, beta, eps=1e-5):
    N, Cin, D, H, W = x.shape
    Cout, K = weight.shape[1], weight.shape[2]
    # y[n,o,d,kd,h,kh,w,kw] = sum_c x[n,c,d,h,w] * weight[c,o,kd,kh,kw]
    y = jnp.einsum("ncdhw,coijk->nodihjwk", x, weight)
    y = y.reshape(N, Cout, D * K, H * K, W * K) + bias[None, :, None, None, None]
    mean = y.mean(axis=(0, 2, 3, 4), keepdims=True)
    var = y.var(axis=(0, 2, 3, 4), keepdims=True)  # biased, like PyTorch BN training
    yn = (y - mean) / jnp.sqrt(var + eps)
    yn = yn * gamma[None, :, None, None, None] + beta[None, :, None, None, None]
    return jnp.maximum(yn, 0.0)


if __name__ == "__main__":
    # Module config: in_ch=4, out_ch=8, kernel_size=2, stride=2, norm='batch',
    # activation='relu', dropout=0.0
    in_ch, out_ch, ksize = 4, 8, 2
    N, D, H, W = 2, 4, 4, 4

    key = jax.random.PRNGKey(0)
    kx, kw, kb, kg, kbeta = jax.random.split(key, 5)

    x = jax.random.normal(kx, (N, in_ch, D, H, W), dtype=jnp.float32)
    # ConvTranspose3d weight layout: (in_ch, out_ch, kD, kH, kW)
    weight = 0.1 * jax.random.normal(kw, (in_ch, out_ch, ksize, ksize, ksize), jnp.float32)
    bias = 0.1 * jax.random.normal(kb, (out_ch,), jnp.float32)
    gamma = 1.0 + 0.1 * jax.random.normal(kg, (out_ch,), jnp.float32)
    beta = 0.1 * jax.random.normal(kbeta, (out_ch,), jnp.float32)

    out = deconv_layer_forward(x, weight, bias, gamma, beta)
    out = jax.block_until_ready(out)

    ref = _reference_forward(x, weight, bias, gamma, beta)
    assert out.shape == (N, out_ch, D * 2, H * 2, W * 2), out.shape
    assert jnp.allclose(out, ref, atol=1e-4, rtol=1e-4), float(jnp.max(jnp.abs(out - ref)))

    print("KERNEL_OK")
</pallas_src>

<mosaic_0001>
module attributes {stable_mosaic.version = 11 : i64} {
  func.func @_deconv_stats_kernel(%arg0: i32, %arg1: i32, %arg2: memref<32x8xf32, #tpu.memory_space<vmem>>, %arg3: memref<8x128xf32, #tpu.memory_space<vmem>>, %arg4: memref<32x128xf32, #tpu.memory_space<vmem>>, %arg5: memref<1x1x128xf32, #tpu.memory_space<vmem>>, %arg6: memref<1x1x128xf32, #tpu.memory_space<vmem>>) attributes {dimension_semantics = [#tpu.dimension_semantics<parallel>, #tpu.dimension_semantics<arbitrary>], iteration_bounds = array<i64: 2, 1>, scalar_prefetch = 0 : i64, scratch_operands = 0 : i64, tpu.core_type = #tpu.core_type<tc>, window_params = [{transform_indices = @transform_0, window_bounds = array<i64: 32, 8>}, {pipeline_mode = #tpu.pipeline_mode<synchronous>, transform_indices = @transform_1, window_bounds = array<i64: 8, 128>}, {transform_indices = @transform_2, window_bounds = array<i64: 32, 128>}, {transform_indices = @transform_3, window_bounds = array<i64: 1, 1, 128>}, {transform_indices = @transform_4, window_bounds = array<i64: 1, 1, 128>}]} {
    %c0_i32 = arith.constant 0 : i32
    %0 = arith.cmpi eq, %arg1, %c0_i32 : i32
    %1 = arith.extui %0 : i1 to i32
    %c0_i32_0 = arith.constant 0 : i32
    %2 = arith.cmpi ne, %1, %c0_i32_0 : i32
    scf.if %2 {
      %cst_20 = arith.constant 0.000000e+00 : f32
      %20 = vector.broadcast %cst_20 : f32 to vector<1x1x128xf32>
      %c0_21 = arith.constant 0 : index
      %c0_22 = arith.constant 0 : index
      %c0_23 = arith.constant 0 : index
      %21 = vector.load %arg5[%c0_21, %c0_22, %c0_23] : memref<1x1x128xf32, #tpu.memory_space<vmem>>, vector<1x1x128xf32>
      tpu.vector_store %arg5[%c0_21, %c0_22, %c0_23], %20 {strides = array<i32>} : memref<1x1x128xf32, #tpu.memory_space<vmem>>, vector<1x1x128xf32>,
      %cst_24 = arith.constant 0.000000e+00 : f32
      %22 = vector.broadcast %cst_24 : f32 to vector<1x1x128xf32>
      %c0_25 = arith.constant 0 : index
      %c0_26 = arith.constant 0 : index
      %c0_27 = arith.constant 0 : index
      %23 = vector.load %arg6[%c0_25, %c0_26, %c0_27] : memref<1x1x128xf32, #tpu.memory_space<vmem>>, vector<1x1x128xf32>
      tpu.vector_store %arg6[%c0_25, %c0_26, %c0_27], %22 {strides = array<i32>} : memref<1x1x128xf32, #tpu.memory_space<vmem>>, vector<1x1x128xf32>,
    } else {
    }
    %c0 = arith.constant 0 : index
    %c0_1 = arith.constant 0 : index
    %3 = vector.load %arg2[%c0, %c0_1] : memref<32x8xf32, #tpu.memory_space<vmem>>, vector<32x8xf32>
    %c0_2 = arith.constant 0 : index
    %c0_3 = arith.constant 0 : index
    %4 = vector.load %arg3[%c0_2, %c0_3] : memref<8x128xf32, #tpu.memory_space<vmem>>, vector<8x128xf32>
    %cst = arith.constant dense<0.000000e+00> : vector<32x128xf32>
    %5 = tpu.matmul %3, %4, %cst {dimension_numbers = #tpu.dot_dimension_numbers<[1], [0], [0], [1], [0, 0, 1, 1], [], []>} : vector<32x8xf32>, vector<8x128xf32>, vector<32x128xf32> -> vector<32x128xf32>
    %c0_4 = arith.constant 0 : index
    %c0_5 = arith.constant 0 : index
    %6 = vector.load %arg4[%c0_4, %c0_5] : memref<32x128xf32, #tpu.memory_space<vmem>>, vector<32x128xf32>
    tpu.vector_store %arg4[%c0_4, %c0_5], %5 {strides = array<i32>} : memref<32x128xf32, #tpu.memory_space<vmem>>, vector<32x128xf32>,
    %cst_6 = arith.constant dense<0.000000e+00> : vector<128xf32>
    %7 = vector.multi_reduction <add>, %5, %cst_6 [0] : vector<32x128xf32> to vector<128xf32>
    %8 = vector.shape_cast %7 : vector<128xf32> to vector<1x128xf32>
    %9 = arith.mulf %5, %5 : vector<32x128xf32>
    %cst_7 = arith.constant dense<0.000000e+00> : vector<128xf32>
    %10 = vector.multi_reduction <add>, %9, %cst_7 [0] : vector<32x128xf32> to vector<128xf32>
    %11 = vector.shape_cast %10 : vector<128xf32> to vector<1x128xf32>
    %c0_8 = arith.constant 0 : index
    %c0_9 = arith.constant 0 : index
    %c0_10 = arith.constant 0 : index
    %12 = vector.load %arg5[%c0_8, %c0_9, %c0_10] : memref<1x1x128xf32, #tpu.memory_space<vmem>>, vector<1x1x128xf32>
    %13 = vector.shape_cast %8 : vector<1x128xf32> to vector<1x1x128xf32>
    %14 = arith.addf %12, %13 : vector<1x1x128xf32>
    %c0_11 = arith.constant 0 : index
    %c0_12 = arith.constant 0 : index
    %c0_13 = arith.constant 0 : index
    %15 = vector.load %arg5[%c0_11, %c0_12, %c0_13] : memref<1x1x128xf32, #tpu.memory_space<vmem>>, vector<1x1x128xf32>
    tpu.vector_store %arg5[%c0_11, %c0_12, %c0_13], %14 {strides = array<i32>} : memref<1x1x128xf32, #tpu.memory_space<vmem>>, vector<1x1x128xf32>,
    %c0_14 = arith.constant 0 : index
    %c0_15 = arith.constant 0 : index
    %c0_16 = arith.constant 0 : index
    %16 = vector.load %arg6[%c0_14, %c0_15, %c0_16] : memref<1x1x128xf32, #tpu.memory_space<vmem>>, vector<1x1x128xf32>
    %17 = vector.shape_cast %11 : vector<1x128xf32> to vector<1x1x128xf32>
    %18 = arith.addf %16, %17 : vector<1x1x128xf32>
    %c0_17 = arith.constant 0 : index
    %c0_18 = arith.constant 0 : index
    %c0_19 = arith.constant 0 : index
    %19 = vector.load %arg6[%c0_17, %c0_18, %c0_19] : memref<1x1x128xf32, #tpu.memory_space<vmem>>, vector<1x1x128xf32>
    tpu.vector_store %arg6[%c0_17, %c0_18, %c0_19], %18 {strides = array<i32>} : memref<1x1x128xf32, #tpu.memory_space<vmem>>, vector<1x1x128xf32>,
    return
  }
  func.func @transform_0(%arg0: i32, %arg1: i32) -> (i32, i32) {
    %c1_i32 = arith.constant 1 : i32
    %0 = arith.muli %arg0, %c1_i32 : i32
    %1 = arith.addi %0, %arg1 : i32
    %c0_i32 = arith.constant 0 : i32
    %c0_i32_0 = arith.constant 0 : i32
    return %1, %c0_i32 : i32, i32
  }
  func.func @transform_1(%arg0: i32, %arg1: i32) -> (i32, i32) {
    %c0_i32 = arith.constant 0 : i32
    %c0_i32_0 = arith.constant 0 : i32
    %c0_i32_1 = arith.constant 0 : i32
    return %c0_i32, %c0_i32_0 : i32, i32
  }
  func.func @transform_2(%arg0: i32, %arg1: i32) -> (i32, i32) {
    %c1_i32 = arith.constant 1 : i32
    %0 = arith.muli %arg0, %c1_i32 : i32
    %1 = arith.addi %0, %arg1 : i32
    %c0_i32 = arith.constant 0 : i32
    %c0_i32_0 = arith.constant 0 : i32
    return %1, %c0_i32 : i32, i32
  }
  func.func @transform_3(%arg0: i32, %arg1: i32) -> (i32, i32, i32) {
    %c0_i32 = arith.constant 0 : i32
    %c0_i32_0 = arith.constant 0 : i32
    %c0_i32_1 = arith.constant 0 : i32
    return %arg0, %c0_i32, %c0_i32_0 : i32, i32, i32
  }
  func.func @transform_4(%arg0: i32, %arg1: i32) -> (i32, i32, i32) {
    %c0_i32 = arith.constant 0 : i32
    %c0_i32_0 = arith.constant 0 : i32
    %c0_i32_1 = arith.constant 0 : i32
    return %arg0, %c0_i32, %c0_i32_0 : i32, i32, i32
  }
}

</mosaic_0001>

<llo_original>
// kernel: tpu_custom_call.1
$region0: #{tpu_custom_call.1}
  #allocation0 [shape = 'u32[]', space=smem, size = 0x4, offset = 0x4, fixed_abs, tag = 'smem constant byte address 0x4 - core index']
  #allocation1 [shape = 'u32[144,128]{1,0:T(1,128)}', space=vmem, size = 0x12000, scoped, tag = 'internal scratch']
  %s0 = inlined_call_operand.vmem [shape: f32[64,8], index: 0, kind: input, shape index: {}]
  %s1 = inlined_call_operand.vmem [shape: f32[8,128], index: 1, kind: input, shape index: {}]
  %s2 = inlined_call_operand.hbm [shape: f32[64,128], index: 2, kind: output, shape index: {0}]
  %s3 = inlined_call_operand.hbm [shape: f32[2,1,128], index: 3, kind: output, shape index: {1}]
  %s4 = inlined_call_operand.hbm [shape: f32[2,1,128], index: 4, kind: output, shape index: {2}]
  %5 = xla_tuple %s2, %s3, %s4
  %s6 = sld [smem:[#allocation0]]
  $region61: #{tpu_custom_call.1} parent=0
    _
  %s8 = ssub.s32 1, %s6
  %s9 = scalar_select 0, %s8, %s6
  $region1: #{tpu_custom_call.1} parent=0
    #allocation2 [shape = 'u8[32768]{0}', space=vmem, size = 0x8000, scoped, tag = 'output window, operand 0']
    #allocation3 [shape = 's32[2]{0}', space=sflag, size = 0x8, scoped, tag = 'scoped memory for tpu_custom_call.1']
    #allocation4 [shape = 'u8[1024]{0}', space=vmem, size = 0x400, scoped, tag = 'output window, operand 1']
    #allocation5 [shape = 's32[2]{0}', space=sflag, size = 0x8, scoped, tag = 'scoped memory for tpu_custom_call.1']
    #allocation6 [shape = 'u8[1024]{0}', space=vmem, size = 0x400, scoped, tag = 'output window, operand 2']
    %10 = vsyncpa [#allocation3], 0
    %s11 = scalar_lea.sflag [#allocation3], 1
    %12 = vsyncpa %s11, 0
    %13 = vsyncpa [#allocation5], 0
    %s14 = scalar_lea.sflag [#allocation5], 1
    %15 = vsyncpa %s14, 0
    loop: start=0, step=1, limit=4
    $region2: #{tpu_custom_call.1} parent=1 // loop_pre_header
      _
    $region3: #{tpu_custom_call.1} parent=1 // loop_header
      %s17 = sphi 0, %s21
      %p18 = scmp.ge.s32.totalorder %s17, 4
      %s24 = sphi 0, %s36
      %s25 = sphi 0, %s32
      %s26 = sphi 0, %s24
      %s27 = sphi 0, %s25
      %s28 = sphi 0, %s26
      %s29 = sphi 0, %s27
      %s41 = sphi 0, %s43
      %s44 = sphi 0, %s41
      %s45 = sphi 0, %s44
      %s61 = sphi 0, %s45
      %s65 = sphi 0, %s65
      %s67 = sphi 0, %s65
      %s68 = sphi 0, %s67
      %s82 = sphi 0, %s68
      %s90 = sphi 0, %s92
      %s93 = sphi 0, %s90
      %s94 = sphi 0, %s93
      %s110 = sphi 0, %s94
      %s116 = sphi 0, %s118
      %s119 = sphi 0, %s116
      %s120 = sphi 0, %s119
      %s136 = sphi 0, %s120
      %s142 = sphi 0, %s144
      %s145 = sphi 0, %s142
      %s146 = sphi 0, %s145
      %s162 = sphi 0, %s146
    $region4: #{tpu_custom_call.1} parent=1 // loop_header_branch
      %20 = sbr.rel (%p18) target = $region8
    $region5: #{tpu_custom_call.1} parent=1 // loop_body
      %s22 = ssub.s32 %s17, 1
      %s23 = ssub.s32 %s17, 2
      %s30 = sadd.s32 1, %s25
      %p31 = scmp.ge.s32.totalorder %s30, 1
      %s32 = scalar_select %p31, 0, %s30
      %s33 = sadd.s32 1, %s24
      %s34 = scalar_select %p31, %s33, %s24
      %p35 = scmp.ge.s32.totalorder %s34, 2
      %s36 = scalar_select %p35, 0, %s34
      %s37 = sadd.s32 %s24, %s25
      %s38 = sadd.s32 %s36, %s32
      %s39 = ssub.s32 %s37, %s38
      %p40 = scmp.eq.s32.totalorder %s39, 0
      %s42 = sadd.s32 %s41, 1
      %s43 = scalar_select %p40, %s41, %s42
      %p46 = pneg %p40
      %p47 = scmp.eq.s32.totalorder %s17, 1
      %p48 = por %p46, %p47
      %p49 = scmp.ne.s32.totalorder %s41, %s44
      %p50 = scmp.eq.s32.totalorder %s17, 0
      %p51 = por %p49, %p50
      %p52 = scmp.ne.s32.totalorder %s41, %s44
      %p53 = scmp.eq.s32.totalorder %s22, 1
      %p54 = por %p52, %p53
      %p55 = scmp.ne.s32.totalorder %s44, %s45
      %p56 = scmp.eq.s32.totalorder %s22, 0
      %p57 = por %p55, %p56
      %p58 = scmp.ne.s32.totalorder %s44, %s45
      %p59 = scmp.eq.s32.totalorder %s23, 1
      %p60 = por %p58, %p59
      %p62 = scmp.ne.s32.totalorder %s45, %s61
      %p63 = scmp.eq.s32.totalorder %s23, 0
      %p64 = por %p62, %p63
      %s66 = sadd.s32 %s65, 1
      %p69 = scmp.eq.s32.totalorder %s17, 1
      %p70 = scmp.ne.s32.totalorder %s65, %s67
      %p71 = scmp.eq.s32.totalorder %s17, 0
      %p72 = por %p70, %p71
      %p73 = scmp.ne.s32.totalorder %s65, %s67
      %p74 = scmp.eq.s32.totalorder %s22, 1
      %p75 = por %p73, %p74
      %p76 = scmp.ne.s32.totalorder %s67, %s68
      %p77 = scmp.eq.s32.totalorder %s22, 0
      %p78 = por %p76, %p77
      %p79 = scmp.ne.s32.totalorder %s67, %s68
      %p80 = scmp.eq.s32.totalorder %s23, 1
      %p81 = por %p79, %p80
      %p83 = scmp.ne.s32.totalorder %s68, %s82
      %p84 = scmp.eq.s32.totalorder %s23, 0
      %p85 = por %p83, %p84
      %s86 = sadd.s32 %s24, %s25
      %s87 = sadd.s32 %s36, %s32
      %s88 = ssub.s32 %s86, %s87
      %p89 = scmp.eq.s32.totalorder %s88, 0
      %s91 = sadd.s32 %s90, 1
      %s92 = scalar_select %p89, %s90, %s91
      %p95 = pneg %p89
      %p96 = scmp.eq.s32.totalorder %s17, 1
      %p97 = por %p95, %p96
      %p98 = scmp.ne.s32.totalorder %s90, %s93
      %p99 = scmp.eq.s32.totalorder %s17, 0
      %p100 = por %p98, %p99
      %p101 = scmp.ne.s32.totalorder %s90, %s93
      %p102 = scmp.eq.s32.totalorder %s22, 1
      %p103 = por %p101, %p102
      %p104 = scmp.ne.s32.totalorder %s93, %s94
      %p105 = scmp.eq.s32.totalorder %s22, 0
      %p106 = por %p104, %p105
      %p107 = scmp.ne.s32.totalorder %s93, %s94
      %p108 = scmp.eq.s32.totalorder %s23, 1
      %p109 = por %p107, %p108
      %p111 = scmp.ne.s32.totalorder %s94, %s110
      %p112 = scmp.eq.s32.totalorder %s23, 0
      %p113 = por %p111, %p112
      %s114 = ssub.s32 %s24, %s36
      %p115 = scmp.eq.s32.totalorder %s114, 0
      %s117 = sadd.s32 %s116, 1
      %s118 = scalar_select %p115, %s116, %s117
      %p121 = pneg %p115
      %p122 = scmp.eq.s32.totalorder %s17, 1
      %p123 = por %p121, %p122
      %p124 = scmp.ne.s32.totalorder %s116, %s119
      %p125 = scmp.eq.s32.totalorder %s17, 0
      %p126 = por %p124, %p125
      %p127 = scmp.ne.s32.totalorder %s116, %s119
      %p128 = scmp.eq.s32.totalorder %s22, 1
      %p129 = por %p127, %p128
      %p130 = scmp.ne.s32.totalorder %s119, %s120
      %p131 = scmp.eq.s32.totalorder %s22, 0
      %p132 = por %p130, %p131
      %p133 = scmp.ne.s32.totalorder %s119, %s120
      %p134 = scmp.eq.s32.totalorder %s23, 1
      %p135 = por %p133, %p134
      %p137 = scmp.ne.s32.totalorder %s120, %s136
      %p138 = scmp.eq.s32.totalorder %s23, 0
      %p139 = por %p137, %p138
      %s140 = ssub.s32 %s24, %s36
      %p141 = scmp.eq.s32.totalorder %s140, 0
      %s143 = sadd.s32 %s142, 1
      %s144 = scalar_select %p141, %s142, %s143
      %p147 = pneg %p141
      %p148 = scmp.eq.s32.totalorder %s17, 1
      %p149 = por %p147, %p148
      %p150 = scmp.ne.s32.totalorder %s142, %s145
      %p151 = scmp.eq.s32.totalorder %s17, 0
      %p152 = por %p150, %p151
      %p153 = scmp.ne.s32.totalorder %s142, %s145
      %p154 = scmp.eq.s32.totalorder %s22, 1
      %p155 = por %p153, %p154
      %p156 = scmp.ne.s32.totalorder %s145, %s146
      %p157 = scmp.eq.s32.totalorder %s22, 0
      %p158 = por %p156, %p157
      %p159 = scmp.ne.s32.totalorder %s145, %s146
      %p160 = scmp.eq.s32.totalorder %s23, 1
      %p161 = por %p159, %p160
      %p163 = scmp.ne.s32.totalorder %s146, %s162
      %p164 = scmp.eq.s32.totalorder %s23, 0
      %p165 = por %p163, %p164
      %p166 = scmp.le.s32.totalorder 1, %s17
      %p167 = scmp.lt.s32.totalorder %s17, 3
      %p168 = pnand %p166, %p167
      %p169 = pneg %p168
      // Predicated region
      $region9: #{tpu_custom_call.1} parent=5 // pred_check
        _
      $region10: #{tpu_custom_call.1} parent=5 // pred_check_branch
        %171 = sbr.rel (%p168) target = $region12
      $region11: #{tpu_custom_call.1} parent=5 // pred_region
        %s172 = ssub.s32 %s17, 1
        // Predicated region
        $region13: #{tpu_custom_call.1} parent=11 // pred_check
          %p173 = pneg %p78
        $region14: #{tpu_custom_call.1} parent=11 // pred_check_branch
          %175 = sbr.rel (%p173) target = $region16
        $region15: #{tpu_custom_call.1} parent=11 // pred_region
          _
        $region16: #{tpu_custom_call.1} parent=11 // pred_fallthru
          _
      $region12: #{tpu_custom_call.1} parent=5 // pred_fallthru
        _
      %p176 = scmp.lt.s32.totalorder %s17, 2
      // Predicated region
      $region17: #{tpu_custom_call.1} parent=5 // pred_check
        %p177 = pneg %p176
      $region18: #{tpu_custom_call.1} parent=5 // pred_check_branch
        %179 = sbr.rel (%p177) target = $region20
      $region19: #{tpu_custom_call.1} parent=5 // pred_region
        // Predicated region
        $region21: #{tpu_custom_call.1} parent=19 // pred_check
          %p180 = pneg %p51
        $region22: #{tpu_custom_call.1} parent=19 // pred_check_branch
          %182 = sbr.rel (%p180) target = $region24
        $region23: #{tpu_custom_call.1} parent=19 // pred_region
          %s183 = sadd.s32 %s24, %s25
          %s184 = smul.u32 4, %s183
          %p185 = scmp.lt.s32.totalorder %s184, 7
          %s186 = scalar_select %p185, %s184, 7
          %s187 = smul.addr %s186, 8
          %s188 = scalar_lea.vmem %s0, %s187
          %s189 = sadd.s32 %s24, %s25
          %s190 = smul.u32 4, %s189
        $region24: #{tpu_custom_call.1} parent=19 // pred_fallthru
          _
      $region20: #{tpu_custom_call.1} parent=5 // pred_fallthru
        _
      %p191 = scmp.le.s32.totalorder 1, %s17
      %p192 = scmp.lt.s32.totalorder %s17, 3
      %p193 = pnand %p191, %p192
      %p194 = pneg %p193
      // Predicated region
      $region25: #{tpu_custom_call.1} parent=5 // pred_check
        _
      $region26: #{tpu_custom_call.1} parent=5 // pred_check_branch
        %196 = sbr.rel (%p193) target = $region28
      $region27: #{tpu_custom_call.1} parent=5 // pred_region
        %s197 = ssub.s32 %s17, 1
        %s198 = sadd.s32 %s26, %s27
        %s199 = smul.u32 4, %s198
        %p200 = scmp.lt.s32.totalorder %s199, 7
        %s201 = scalar_select %p200, %s199, 7
        %s202 = smul.addr %s201, 8
        %s203 = scalar_lea.vmem %s0, %s202
        %p204 = pneg %p57
        %p205 = pneg %p54
        %p206 = pneg %p78
        %p207 = pneg %p75
        %p208 = pneg %p106
        %p209 = pneg %p103
        %s210 = sand.u32 %s93, 1
        %s211 = scalar_lea.sflag [#allocation3], %s210
        %s212 = sand.u32 %s93, 1
        %s213 = smul.addr %s212, 32
        %s214 = scalar_lea.vmem [#allocation2], %s213
        %p215 = pneg %p132
        %p216 = pneg %p129
        %s217 = sand.u32 %s22, 1
        %s218 = scalar_lea.sflag [#allocation5], %s217
        %s219 = sand.u32 %s119, 1
        %s220 = scalar_lea.vmem [#allocation4], %s219
        %p221 = pneg %p158
        %p222 = pneg %p155
        %s223 = sand.u32 %s22, 1
        %s224 = scalar_lea.sflag [#allocation5], %s223
        %s225 = sand.u32 %s145, 1
        %s226 = scalar_lea.vmem [#allocation6], %s225
        %s227 = sadd.s32 %s26, %s27
        %s228 = smul.u32 4, %s227
        %p229 = scmp.lt.s32.totalorder %s228, 7
        %s230 = scalar_select %p229, %s228, 7
        %s231 = smul.addr %s230, 8
        %s232 = scalar_lea.vmem %s0, %s231
        %s233 = sadd.s32 %s26, %s27
        %s234 = smul.u32 4, %s233
        %s235 = sadd.s32 %s26, %s27
        %s236 = smul.u32 4, %s235
        %p237 = scmp.eq.s32.totalorder %s27, 0
        // Predicated region
        $region29: #{tpu_custom_call.1} parent=27 // pred_check
          %p238 = pneg %p237
        $region30: #{tpu_custom_call.1} parent=27 // pred_check_branch
          %240 = sbr.rel (%p238) target = $region32
        $region31: #{tpu_custom_call.1} parent=27 // pred_region
          %241 = vst [vmem:[%s220] sm:$0x1] 0.0
          %242 = vst [vmem:[%s226] sm:$0x1] 0.0
        $region32: #{tpu_custom_call.1} parent=27 // pred_fallthru
          _
        %v243 = vld [vmem:[%s232] sm:$0xff]
        %v244 = vld [vmem:[%s232 + $0x8] sm:$0xff]
        %v245 = vld [vmem:[%s232 + $0x10] sm:$0xff]
        %v246 = vld [vmem:[%s232 + $0x18] sm:$0xff]
        %v247 = vld [vmem:[%s1] sm:$0xff]
        %vm248 = vcmask 64512
        %v250 = vsel %vm248, %v243, 0
        %v253 = vsel %vm248, %v244, 0
        %v256 = vsel %vm248, %v245, 0
        %v259 = vsel %vm248, %v246, 0
        %261 = vmatprep.subr.mxu0 0.0
        %262 = vmatpush1.msra.mxu0 0.0
        %263 = vmatprep.subr.mxu0 0.0
        %264 = vmatpush1.msra.mxu0 0.0
        %265 = vmatprep.subr.mxu0 0.0
        %266 = vmatpush1.msra.mxu0 0.0
        %267 = vmatprep.subr.mxu0 0.0
        %268 = vmatpush1.msra.mxu0 0.0
        %269 = vmatprep.subr.mxu0 0.0
        %270 = vmatpush1.msra.mxu0 0.0
        %271 = vmatprep.subr.mxu0 0.0
        %272 = vmatpush1.msra.mxu0 0.0
        %273 = vmatprep.subr.mxu0 0.0
        %274 = vmatpush1.msra.mxu0 0.0
        %275 = vmatprep.subr.mxu0 0.0
        %276 = vmatpush1.msra.mxu0 0.0
        %277 = vmatprep.subr.mxu0 0.0
        %278 = vmatpush1.msra.mxu0 0.0
        %279 = vmatprep.subr.mxu0 0.0
        %280 = vmatpush1.msra.mxu0 0.0
        %281 = vmatprep.subr.mxu0 0.0
        %282 = vmatpush1.msra.mxu0 0.0
        %283 = vmatprep.subr.mxu0 0.0
        %284 = vmatpush1.msra.mxu0 0.0
        %285 = vmatprep.subr.mxu0 0.0
        %286 = vmatpush1.msra.mxu0 0.0
        %287 = vmatprep.subr.mxu0 0.0
        %288 = vmatpush1.msra.mxu0 0.0
        %289 = vmatprep.subr.mxu0 0.0
        %290 = vmatpush1.msra.mxu0 0.0
        %291 = vmatprep.subr.mxu0 0.0
        %292 = vmatpush1.msra.mxu0 %v247
        %293 = vmatprep.subr.mxu0 0.0
        %294 = vmatpush2.msra.mxu0 0.0
        %295 = vmatprep.subr.mxu0 0.0
        %296 = vmatpush2.msra.mxu0 0.0
        %297 = vmatprep.subr.mxu0 0.0
        %298 = vmatpush2.msra.mxu0 0.0
        %299 = vmatprep.subr.mxu0 0.0
        %300 = vmatpush2.msra.mxu0 0.0
        %301 = vmatprep.subr.mxu0 0.0
        %302 = vmatpush2.msra.mxu0 0.0
        %303 = vmatprep.subr.mxu0 0.0
        %304 = vmatpush2.msra.mxu0 0.0
        %305 = vmatprep.subr.mxu0 0.0
        %306 = vmatpush2.msra.mxu0 0.0
        %307 = vmatprep.subr.mxu0 0.0
        %308 = vmatpush2.msra.mxu0 0.0
        %309 = vmatprep.subr.mxu0 0.0
        %310 = vmatpush2.msra.mxu0 0.0
        %311 = vmatprep.subr.mxu0 0.0
        %312 = vmatpush2.msra.mxu0 0.0
        %313 = vmatprep.subr.mxu0 0.0
        %314 = vmatpush2.msra.mxu0 0.0
        %315 = vmatprep.subr.mxu0 0.0
        %316 = vmatpush2.msra.mxu0 0.0
        %317 = vmatprep.subr.mxu0 0.0
        %318 = vmatpush2.msra.mxu0 0.0
        %319 = vmatprep.subr.mxu0 0.0
        %320 = vmatpush2.msra.mxu0 0.0
        %321 = vmatprep.subr.mxu0 0.0
        %322 = vmatpush2.msra.mxu0 0.0
        %323 = vmatprep.subr.mxu0 0.0
        %324 = vmatpush2.msra.mxu0 0.0
        %325 = vmatprep.mubr.f32.mxu0 0.0
        %326 = vmatmul.mubr.f32.gmra.mxu0 %v250
        %v327 = vpop.f32.mrf.mxu0
        %v328 = vadd.f32 0.0, %v327
        %v329 = vpop.f32.mrf.mxu0
        %330 = vmatprep.mubr.f32.mxu0 0.0
        %331 = vmatmul.mubr.f32.gmra.mxu0 %v253
        %v332 = vpop.f32.mrf.mxu0
        %v333 = vadd.f32 0.0, %v332
        %v334 = vpop.f32.mrf.mxu0
        %335 = vmatprep.mubr.f32.mxu0 0.0
        %336 = vmatmul.mubr.f32.gmra.mxu0 %v256
        %v337 = vpop.f32.mrf.mxu0
        %v338 = vadd.f32 0.0, %v337
        %v339 = vpop.f32.mrf.mxu0
        %340 = vmatprep.mubr.f32.mxu0 0.0
        %341 = vmatmul.mubr.f32.gmra.mxu0 %v259
        %v342 = vpop.f32.mrf.mxu0
        %v343 = vadd.f32 0.0, %v342
        %v344 = vpop.f32.mrf.mxu0
        %345 = vdwg.mxu0
        %346 = vst [vmem:[%s214] sm:$0xff] %v328
        %347 = vst [vmem:[%s214 + $0x8] sm:$0xff] %v333
        %348 = vst [vmem:[%s214 + $0x10] sm:$0xff] %v338
        %349 = vst [vmem:[%s214 + $0x18] sm:$0xff] %v343
        %v350 = vadd.f32 %v328, %v333
        %v351 = vadd.f32 %v350, %v338
        %v352 = vadd.f32 %v351, %v343
        %v353 = vrot.slane %v352, 4
        %v354 = vadd.f32 %v352, %v353
        %v355 = vrot.slane %v354, 2
        %v356 = vadd.f32 %v354, %v355
        %v357 = vrot.slane %v356, 1
        %v358 = vadd.f32 %v356, %v357
        %v359 = vmul.f32 %v328, %v328
        %v360 = vmul.f32 %v333, %v333
        %v361 = vmul.f32 %v338, %v338
        %v362 = vmul.f32 %v343, %v343
        %v363 = vadd.f32 %v359, %v360
        %v364 = vadd.f32 %v363, %v361
        %v365 = vadd.f32 %v364, %v362
        %v366 = vrot.slane %v365, 4
        %v367 = vadd.f32 %v365, %v366
        %v368 = vrot.slane %v367, 2
        %v369 = vadd.f32 %v367, %v368
        %v370 = vrot.slane %v369, 1
        %v371 = vadd.f32 %v369, %v370
        %v372 = vld [vmem:[%s220] sm:$0x1]
        %v373 = vadd.f32 %v372, %v358
        %374 = vst [vmem:[%s220] sm:$0x1] %v373
        %v375 = vld [vmem:[%s226] sm:$0x1]
        %v376 = vadd.f32 %v375, %v371
        %377 = vst [vmem:[%s226] sm:$0x1] %v376
        %s378 = sand.u32 %s93, 1
        %s379 = scalar_lea.sflag [#allocation3], %s378
        %s380 = sand.u32 %s93, 1
        %s381 = smul.addr %s380, 32
        %s382 = scalar_lea.vmem [#allocation2], %s381
        %s383 = sand.u32 %s22, 1
        %s384 = scalar_lea.sflag [#allocation5], %s383
        %s385 = sand.u32 %s119, 1
        %s386 = scalar_lea.vmem [#allocation4], %s385
        %s387 = sand.u32 %s22, 1
        %s388 = scalar_lea.sflag [#allocation5], %s387
        %s389 = sand.u32 %s145, 1
        %s390 = scalar_lea.vmem [#allocation6], %s389
        // Predicated region
        $region33: #{tpu_custom_call.1} parent=27 // pred_check
          %p391 = pneg %p103
        $region34: #{tpu_custom_call.1} parent=27 // pred_check_branch
          %393 = sbr.rel (%p391) target = $region36
        $region35: #{tpu_custom_call.1} parent=27 // pred_region
          %s394 = sadd.s32 %s26, %s27
          %s395 = smul.u32 4, %s394
          %s397 = ssub.s32 512, 512
          %398 = vsyncadd %s379, %s397
          %s399 = smul.addr %s395, 128
          %s400 = scalar_lea.hbm %s2, %s399
          %s401 = sshll.u32 %s382, 4
          %s402 = int_to_ptr.vmem [resolvable:$true] %s401
          %407 = dma.vmem_to_hbm [thread:$0]  %s402, 512, %s400, %s379, 128, 128, 8
        $region36: #{tpu_custom_call.1} parent=27 // pred_fallthru
          _
        // Predicated region
        $region37: #{tpu_custom_call.1} parent=27 // pred_check
          %p408 = pneg %p129
        $region38: #{tpu_custom_call.1} parent=27 // pred_check_branch
          %410 = sbr.rel (%p408) target = $region40
        $region39: #{tpu_custom_call.1} parent=27 // pred_region
          %s412 = ssub.s32 16, 16
          %413 = vsyncadd %s384, %s412
          %s414 = smul.addr %s26, 16
          %s415 = scalar_lea.hbm %s3, %s414
          %s417 = sshll.u32 %s386, 4
          %s418 = int_to_ptr.vmem [resolvable:$true] %s417
          %420 = dma.vmem_to_hbm [thread:$0]  %s418, 16, %s415, %s384
        $region40: #{tpu_custom_call.1} parent=27 // pred_fallthru
          _
        // Predicated region
        $region41: #{tpu_custom_call.1} parent=27 // pred_check
          %p421 = pneg %p155
        $region42: #{tpu_custom_call.1} parent=27 // pred_check_branch
          %423 = sbr.rel (%p421) target = $region44
        $region43: #{tpu_custom_call.1} parent=27 // pred_region
          %s425 = ssub.s32 16, 16
          %426 = vsyncadd %s388, %s425
          %s427 = smul.addr %s26, 16
          %s428 = scalar_lea.hbm %s4, %s427
          %s430 = sshll.u32 %s390, 4
          %s431 = int_to_ptr.vmem [resolvable:$true] %s430
          %433 = dma.vmem_to_hbm [thread:$0]  %s431, 16, %s428, %s388
        $region44: #{tpu_custom_call.1} parent=27 // pred_fallthru
          _
      $region28: #{tpu_custom_call.1} parent=5 // pred_fallthru
        _
      %p434 = scmp.le.s32.totalorder 2, %s17
      // Predicated region
      $region45: #{tpu_custom_call.1} parent=5 // pred_check
        %p435 = pneg %p434
      $region46: #{tpu_custom_call.1} parent=5 // pred_check_branch
        %437 = sbr.rel (%p435) target = $region48
      $region47: #{tpu_custom_call.1} parent=5 // pred_region
        %s438 = ssub.s32 %s17, 2
        // Predicated region
        $region49: #{tpu_custom_call.1} parent=47 // pred_check
          %p439 = pneg %p109
        $region50: #{tpu_custom_call.1} parent=47 // pred_check_branch
          %441 = sbr.rel (%p439) target = $region52
        $region51: #{tpu_custom_call.1} parent=47 // pred_region
          %s442 = sand.u32 %s94, 1
          %s443 = scalar_lea.sflag [#allocation3], %s442
          %s444 = sand.u32 %s94, 1
          %s445 = smul.addr %s444, 32
          %s446 = scalar_lea.vmem [#allocation2], %s445
          %447 = dma.done %s443, 512
        $region52: #{tpu_custom_call.1} parent=47 // pred_fallthru
          _
        // Predicated region
        $region53: #{tpu_custom_call.1} parent=47 // pred_check
          %p448 = pneg %p135
        $region54: #{tpu_custom_call.1} parent=47 // pred_check_branch
          %450 = sbr.rel (%p448) target = $region56
        $region55: #{tpu_custom_call.1} parent=47 // pred_region
          %s451 = sand.u32 %s23, 1
          %s452 = scalar_lea.sflag [#allocation5], %s451
          %s453 = sand.u32 %s120, 1
          %s454 = scalar_lea.vmem [#allocation4], %s453
          %455 = dma.done %s452, 16
        $region56: #{tpu_custom_call.1} parent=47 // pred_fallthru
          _
        // Predicated region
        $region57: #{tpu_custom_call.1} parent=47 // pred_check
          %p456 = pneg %p161
        $region58: #{tpu_custom_call.1} parent=47 // pred_check_branch
          %458 = sbr.rel (%p456) target = $region60
        $region59: #{tpu_custom_call.1} parent=47 // pred_region
          %s459 = sand.u32 %s23, 1
          %s460 = scalar_lea.sflag [#allocation5], %s459
          %s461 = sand.u32 %s146, 1
          %s462 = scalar_lea.vmem [#allocation6], %s461
          %463 = dma.done %s460, 16
        $region60: #{tpu_custom_call.1} parent=47 // pred_fallthru
          _
      $region48: #{tpu_custom_call.1} parent=5 // pred_fallthru
        _
    $region6: #{tpu_custom_call.1} parent=1 // loop_footer
      %s21 = sadd.s32 1, %s17
    $region7: #{tpu_custom_call.1} parent=1 // loop_footer_branch
      %16 = sbr.rel target = $region3
    $region8: #{tpu_custom_call.1} parent=1 // loop_exit
      _
    %464 = vsyncpa [#allocation3], 1
    %s465 = scalar_lea.sflag [#allocation3], 1
    %466 = vsyncpa %s465, 1
    %467 = vsyncpa [#allocation5], 1
    %s468 = scalar_lea.sflag [#allocation5], 1
    %469 = vsyncpa %s468, 1

</llo_original>
